<compile_context>
chip_gen: v5e
topology: v5e:2x2
jax: 0.10.0
libtpu: 0.0.40
codegen_flags: <defaults>
</compile_context>

<pallas_src>
import functools

import jax
import jax.numpy as jnp
from jax.experimental import pallas as pl
from jax.experimental.pallas import tpu as pltpu


def _mlp_kernel(x_ref, w1_ref, b1_ref, w2_ref, b2_ref, w3_ref, b3_ref, o_ref):
    # x tile: (tile_m, input_size) bf16; weights bf16; biases f32.
    x = x_ref[...]

    # Layer 1: Linear + ReLU (f32 accumulation on the MXU).
    h = jnp.dot(x, w1_ref[...], preferred_element_type=jnp.float32) + b1_ref[...]
    h = jnp.maximum(h, 0.0)

    # Layer 2: Linear + ReLU.
    h = jnp.dot(h.astype(jnp.bfloat16), w2_ref[...],
                preferred_element_type=jnp.float32) + b2_ref[...]
    h = jnp.maximum(h, 0.0)

    # Layer 3: Linear + ReLU (output is lane-padded to a multiple of 128).
    o = jnp.dot(h.astype(jnp.bfloat16), w3_ref[...],
                preferred_element_type=jnp.float32) + b3_ref[...]
    o_ref[...] = jnp.maximum(o, 0.0)


def influencer_brand_encoder(x, w1, b1, w2, b2, w3, b3, *, tile_m=256):
    """Forward pass of InfluencerBrandEncoder.

    x:  (B, input_size) float
    wK: (in_k, out_k)   -- transposed relative to torch's (out, in) layout
    bK: (1, out_k)
    Returns (B, output_size) float32.
    """
    B, input_size = x.shape
    hidden_size = w1.shape[1]
    output_size = w3.shape[1]

    # ---- lane-dense output: pad the output feature dim to a multiple of 128.
    out_pad = max(128, pl.cdiv(output_size, 128) * 128)

    # ---- batch tiling: big tiles, but keep >= 2 grid steps when possible so
    #      v7x's two TensorCores both get work.
    if B >= 2 * tile_m:
        tm = tile_m
    else:
        tm = max(8, min(tile_m, pl.cdiv((B + 1) // 2, 8) * 8))
    B_pad = pl.cdiv(B, tm) * tm
    grid = (B_pad // tm,)

    # ---- dtype / padding plumbing (outside the kernel).
    xf = x.astype(jnp.float32)                       # mirrors torch's x.float()
    x_p = jnp.pad(xf, ((0, B_pad - B), (0, 0))).astype(jnp.bfloat16)

    w1_b = w1.astype(jnp.bfloat16)
    w2_b = w2.astype(jnp.bfloat16)
    w3_b = jnp.pad(w3, ((0, 0), (0, out_pad - output_size))).astype(jnp.bfloat16)
    b1_f = b1.astype(jnp.float32)
    b2_f = b2.astype(jnp.float32)
    b3_f = jnp.pad(b3.astype(jnp.float32), ((0, 0), (0, out_pad - output_size)))

    # Weights / biases: whole-array VMEM residents (constant across the grid,
    # single-buffered, DMA'd once). Only x and the output are pipelined.
    vmem = functools.partial(pl.BlockSpec, memory_space=pltpu.MemorySpace.VMEM)
    in_specs = [
        pl.BlockSpec((tm, input_size), lambda i: (i, 0)),   # x (pipelined)
        vmem(),  # w1
        vmem(),  # b1
        vmem(),  # w2
        vmem(),  # b2
        vmem(),  # w3
        vmem(),  # b3
    ]
    out_spec = pl.BlockSpec((tm, out_pad), lambda i: (i, 0))

    flops = 2 * B_pad * (input_size * hidden_size
                         + hidden_size * hidden_size
                         + hidden_size * out_pad)
    bytes_accessed = (
        x_p.size * 2
        + (w1_b.size + w2_b.size + w3_b.size) * 2
        + (b1_f.size + b2_f.size + b3_f.size) * 4
        + B_pad * out_pad * 4
    )

    out_padded = pl.pallas_call(
        _mlp_kernel,
        out_shape=jax.ShapeDtypeStruct((B_pad, out_pad), jnp.float32),
        grid_spec=pltpu.PrefetchScalarGridSpec(
            num_scalar_prefetch=0,
            grid=grid,
            in_specs=in_specs,
            out_specs=out_spec,
        ),
        compiler_params=pltpu.CompilerParams(
            dimension_semantics=("parallel",),
        ),
        cost_estimate=pl.CostEstimate(
            flops=flops, transcendentals=0, bytes_accessed=bytes_accessed),
    )(x_p, w1_b, b1_f, w2_b, b2_f, w3_b, b3_f)

    # Strip batch and output-feature padding.
    return out_padded[:B, :output_size]


def _reference(x, w1, b1, w2, b2, w3, b3):
    h = jnp.maximum(x.astype(jnp.float32) @ w1 + b1, 0.0)
    h = jnp.maximum(h @ w2 + b2, 0.0)
    return jnp.maximum(h @ w3 + b3, 0.0)


if __name__ == "__main__":
    # Shapes consistent with the module: input=32, hidden=64, output=16.
    input_size, hidden_size, output_size = 32, 64, 16

    key = jax.random.PRNGKey(0)
    kx1, kx2, k1, k2, k3, kb1, kb2, kb3 = jax.random.split(key, 8)

    # Deterministic parameter init (uniform, torch-Linear-style bounds),
    # stored pre-transposed as (in, out).  (From a torch state dict you would
    # pass weight.T.)
    def init_w(k, fan_in, fan_out):
        bound = 1.0 / jnp.sqrt(fan_in)
        return jax.random.uniform(k, (fan_in, fan_out), jnp.float32, -bound, bound)

    def init_b(k, fan_in, fan_out):
        bound = 1.0 / jnp.sqrt(fan_in)
        return jax.random.uniform(k, (1, fan_out), jnp.float32, -bound, bound)

    w1 = init_w(k1, input_size, hidden_size)
    b1 = init_b(kb1, input_size, hidden_size)
    w2 = init_w(k2, hidden_size, hidden_size)
    b2 = init_b(kb2, hidden_size, hidden_size)
    w3 = init_w(k3, hidden_size, output_size)
    b3 = init_b(kb3, hidden_size, output_size)

    # Main case: B=512 -> tile_m=256, 2 grid steps (both v7x TCs used).
    # Second case: ragged batch (B=20) exercises the padding path.
    for kx, B in ((kx1, 512), (kx2, 20)):
        x = jax.random.normal(kx, (B, input_size), dtype=jnp.float32)

        out = influencer_brand_encoder(x, w1, b1, w2, b2, w3, b3)
        out = jax.block_until_ready(out)

        ref = _reference(x, w1, b1, w2, b2, w3, b3)
        assert out.shape == (B, output_size)
        # bf16 MXU operands with f32 accumulation -> relaxed tolerance.
        assert jnp.allclose(out, ref, atol=5e-2, rtol=5e-2), "mismatch vs reference"

    print("KERNEL_OK")
</pallas_src>

<mosaic_0001>
module attributes {stable_mosaic.version = 11 : i64} {
  func.func @_mlp_kernel(%arg0: i32, %arg1: memref<256x32xbf16, #tpu.memory_space<vmem>>, %arg2: memref<32x64xbf16, #tpu.memory_space<vmem>>, %arg3: memref<1x64xf32, #tpu.memory_space<vmem>>, %arg4: memref<64x64xbf16, #tpu.memory_space<vmem>>, %arg5: memref<1x64xf32, #tpu.memory_space<vmem>>, %arg6: memref<64x128xbf16, #tpu.memory_space<vmem>>, %arg7: memref<1x128xf32, #tpu.memory_space<vmem>>, %arg8: memref<256x128xf32, #tpu.memory_space<vmem>>) attributes {dimension_semantics = [#tpu.dimension_semantics<parallel>], iteration_bounds = array<i64: 2>, scalar_prefetch = 0 : i64, scratch_operands = 0 : i64, tpu.core_type = #tpu.core_type<tc>, window_params = [{transform_indices = @transform_0, window_bounds = array<i64: 256, 32>}, {pipeline_mode = #tpu.pipeline_mode<synchronous>, transform_indices = @transform_1, window_bounds = array<i64: 32, 64>}, {pipeline_mode = #tpu.pipeline_mode<synchronous>, transform_indices = @transform_2, window_bounds = array<i64: 1, 64>}, {pipeline_mode = #tpu.pipeline_mode<synchronous>, transform_indices = @transform_3, window_bounds = array<i64: 64, 64>}, {pipeline_mode = #tpu.pipeline_mode<synchronous>, transform_indices = @transform_4, window_bounds = array<i64: 1, 64>}, {pipeline_mode = #tpu.pipeline_mode<synchronous>, transform_indices = @transform_5, window_bounds = array<i64: 64, 128>}, {pipeline_mode = #tpu.pipeline_mode<synchronous>, transform_indices = @transform_6, window_bounds = array<i64: 1, 128>}, {transform_indices = @transform_7, window_bounds = array<i64: 256, 128>}]} {
    %c0 = arith.constant 0 : index
    %c0_0 = arith.constant 0 : index
    %0 = vector.load %arg1[%c0, %c0_0] : memref<256x32xbf16, #tpu.memory_space<vmem>>, vector<256x32xbf16>
    %c0_1 = arith.constant 0 : index
    %c0_2 = arith.constant 0 : index
    %1 = vector.load %arg2[%c0_1, %c0_2] : memref<32x64xbf16, #tpu.memory_space<vmem>>, vector<32x64xbf16>
    %cst = arith.constant dense<0.000000e+00> : vector<256x64xf32>
    %2 = tpu.matmul %0, %1, %cst {dimension_numbers = #tpu.dot_dimension_numbers<[1], [0], [0], [1], [0, 0, 1, 1], [], []>} : vector<256x32xbf16>, vector<32x64xbf16>, vector<256x64xf32> -> vector<256x64xf32>
    %c0_3 = arith.constant 0 : index
    %c0_4 = arith.constant 0 : index
    %3 = vector.load %arg3[%c0_3, %c0_4] : memref<1x64xf32, #tpu.memory_space<vmem>>, vector<1x64xf32>
    %4 = vector.broadcast %3 : vector<1x64xf32> to vector<256x64xf32>
    %5 = arith.addf %2, %4 : vector<256x64xf32>
    %cst_5 = arith.constant 0.000000e+00 : f32
    %6 = vector.broadcast %cst_5 : f32 to vector<256x64xf32>
    %7 = arith.maximumf %5, %6 : vector<256x64xf32>
    %8 = arith.truncf %7 : vector<256x64xf32> to vector<256x64xbf16>
    %c0_6 = arith.constant 0 : index
    %c0_7 = arith.constant 0 : index
    %9 = vector.load %arg4[%c0_6, %c0_7] : memref<64x64xbf16, #tpu.memory_space<vmem>>, vector<64x64xbf16>
    %cst_8 = arith.constant dense<0.000000e+00> : vector<256x64xf32>
    %10 = tpu.matmul %8, %9, %cst_8 {dimension_numbers = #tpu.dot_dimension_numbers<[1], [0], [0], [1], [0, 0, 1, 1], [], []>} : vector<256x64xbf16>, vector<64x64xbf16>, vector<256x64xf32> -> vector<256x64xf32>
    %c0_9 = arith.constant 0 : index
    %c0_10 = arith.constant 0 : index
    %11 = vector.load %arg5[%c0_9, %c0_10] : memref<1x64xf32, #tpu.memory_space<vmem>>, vector<1x64xf32>
    %12 = vector.broadcast %11 : vector<1x64xf32> to vector<256x64xf32>
    %13 = arith.addf %10, %12 : vector<256x64xf32>
    %cst_11 = arith.constant 0.000000e+00 : f32
    %14 = vector.broadcast %cst_11 : f32 to vector<256x64xf32>
    %15 = arith.maximumf %13, %14 : vector<256x64xf32>
    %16 = arith.truncf %15 : vector<256x64xf32> to vector<256x64xbf16>
    %c0_12 = arith.constant 0 : index
    %c0_13 = arith.constant 0 : index
    %17 = vector.load %arg6[%c0_12, %c0_13] : memref<64x128xbf16, #tpu.memory_space<vmem>>, vector<64x128xbf16>
    %cst_14 = arith.constant dense<0.000000e+00> : vector<256x128xf32>
    %18 = tpu.matmul %16, %17, %cst_14 {dimension_numbers = #tpu.dot_dimension_numbers<[1], [0], [0], [1], [0, 0, 1, 1], [], []>} : vector<256x64xbf16>, vector<64x128xbf16>, vector<256x128xf32> -> vector<256x128xf32>
    %c0_15 = arith.constant 0 : index
    %c0_16 = arith.constant 0 : index
    %19 = vector.load %arg7[%c0_15, %c0_16] : memref<1x128xf32, #tpu.memory_space<vmem>>, vector<1x128xf32>
    %20 = vector.broadcast %19 : vector<1x128xf32> to vector<256x128xf32>
    %21 = arith.addf %18, %20 : vector<256x128xf32>
    %cst_17 = arith.constant 0.000000e+00 : f32
    %22 = vector.broadcast %cst_17 : f32 to vector<256x128xf32>
    %23 = arith.maximumf %21, %22 : vector<256x128xf32>
    %c0_18 = arith.constant 0 : index
    %c0_19 = arith.constant 0 : index
    %24 = vector.load %arg8[%c0_18, %c0_19] : memref<256x128xf32, #tpu.memory_space<vmem>>, vector<256x128xf32>
    tpu.vector_store %arg8[%c0_18, %c0_19], %23 {strides = array<i32>} : memref<256x128xf32, #tpu.memory_space<vmem>>, vector<256x128xf32>,
    return
  }
  func.func @transform_0(%arg0: i32) -> (i32, i32) {
    %c0_i32 = arith.constant 0 : i32
    %c0_i32_0 = arith.constant 0 : i32
    return %arg0, %c0_i32 : i32, i32
  }
  func.func @transform_1(%arg0: i32) -> (i32, i32) {
    %c0_i32 = arith.constant 0 : i32
    %c0_i32_0 = arith.constant 0 : i32
    %c0_i32_1 = arith.constant 0 : i32
    return %c0_i32, %c0_i32_0 : i32, i32
  }
  func.func @transform_2(%arg0: i32) -> (i32, i32) {
    %c0_i32 = arith.constant 0 : i32
    %c0_i32_0 = arith.constant 0 : i32
    %c0_i32_1 = arith.constant 0 : i32
    return %c0_i32, %c0_i32_0 : i32, i32
  }
  func.func @transform_3(%arg0: i32) -> (i32, i32) {
    %c0_i32 = arith.constant 0 : i32
    %c0_i32_0 = arith.constant 0 : i32
    %c0_i32_1 = arith.constant 0 : i32
    return %c0_i32, %c0_i32_0 : i32, i32
  }
  func.func @transform_4(%arg0: i32) -> (i32, i32) {
    %c0_i32 = arith.constant 0 : i32
    %c0_i32_0 = arith.constant 0 : i32
    %c0_i32_1 = arith.constant 0 : i32
    return %c0_i32, %c0_i32_0 : i32, i32
  }
  func.func @transform_5(%arg0: i32) -> (i32, i32) {
    %c0_i32 = arith.constant 0 : i32
    %c0_i32_0 = arith.constant 0 : i32
    %c0_i32_1 = arith.constant 0 : i32
    return %c0_i32, %c0_i32_0 : i32, i32
  }
  func.func @transform_6(%arg0: i32) -> (i32, i32) {
    %c0_i32 = arith.constant 0 : i32
    %c0_i32_0 = arith.constant 0 : i32
    %c0_i32_1 = arith.constant 0 : i32
    return %c0_i32, %c0_i32_0 : i32, i32
  }
  func.func @transform_7(%arg0: i32) -> (i32, i32) {
    %c0_i32 = arith.constant 0 : i32
    %c0_i32_0 = arith.constant 0 : i32
    return %arg0, %c0_i32 : i32, i32
  }
}

</mosaic_0001>

<llo_original>
// kernel: tpu_custom_call.1
$region0: #{tpu_custom_call.1}
  #allocation0 [shape = 'u32[]', space=smem, size = 0x4, offset = 0x4, fixed_abs, tag = 'smem constant byte address 0x4 - core index']
  #allocation1 [shape = 'u32[72,128]{1,0:T(1,128)}', space=vmem, size = 0x9000, scoped, tag = 'internal scratch']
  %s0 = inlined_call_operand.vmem [shape: bf16[512,32], index: 0, kind: input, shape index: {}]
  %s1 = inlined_call_operand.vmem [shape: bf16[32,64], index: 1, kind: input, shape index: {}]
  %s2 = inlined_call_operand.vmem [shape: f32[1,64], index: 2, kind: input, shape index: {}]
  %s3 = inlined_call_operand.vmem [shape: bf16[64,64], index: 3, kind: input, shape index: {}]
  %s4 = inlined_call_operand.vmem [shape: f32[1,64], index: 4, kind: input, shape index: {}]
  %s5 = inlined_call_operand.vmem [shape: bf16[64,128], index: 5, kind: input, shape index: {}]
  %s6 = inlined_call_operand.vmem [shape: f32[1,128], index: 6, kind: input, shape index: {}]
  %s7 = inlined_call_operand.hbm [shape: f32[512,128], index: 7, kind: output, shape index: {}]
  %s8 = sld [smem:[#allocation0]]
  $region61: #{tpu_custom_call.1} parent=0
    _
  %s10 = ssub.s32 1, %s8
  %s11 = scalar_select 0, %s10, %s8
  $region1: #{tpu_custom_call.1} parent=0
    #allocation2 [shape = 'u8[262144]{0}', space=vmem, size = 0x40000, scoped, tag = 'output window, operand 0']
    #allocation3 [shape = 's32[2]{0}', space=sflag, size = 0x8, scoped, tag = 'scoped memory for tpu_custom_call.1']
    %12 = vsyncpa [#allocation3], 0
    %s13 = scalar_lea.sflag [#allocation3], 1
    %14 = vsyncpa %s13, 0
    loop: start=0, step=1, limit=4
    $region2: #{tpu_custom_call.1} parent=1 // loop_pre_header
      _
    $region3: #{tpu_custom_call.1} parent=1 // loop_header
      %s16 = sphi 0, %s20
      %p17 = scmp.ge.s32.totalorder %s16, 4
      %s26 = sphi 0, %s28
      %s29 = sphi 0, %s26
      %s30 = sphi 0, %s29
      %s46 = sphi 0, %s30
      %s50 = sphi 0, %s50
      %s52 = sphi 0, %s50
      %s53 = sphi 0, %s52
      %s67 = sphi 0, %s53
      %s71 = sphi 0, %s71
      %s73 = sphi 0, %s71
      %s74 = sphi 0, %s73
      %s88 = sphi 0, %s74
      %s92 = sphi 0, %s92
      %s94 = sphi 0, %s92
      %s95 = sphi 0, %s94
      %s109 = sphi 0, %s95
      %s113 = sphi 0, %s113
      %s115 = sphi 0, %s113
      %s116 = sphi 0, %s115
      %s130 = sphi 0, %s116
      %s134 = sphi 0, %s134
      %s136 = sphi 0, %s134
      %s137 = sphi 0, %s136
      %s151 = sphi 0, %s137
      %s155 = sphi 0, %s155
      %s157 = sphi 0, %s155
      %s158 = sphi 0, %s157
      %s172 = sphi 0, %s158
      %s178 = sphi 0, %s180
      %s181 = sphi 0, %s178
      %s182 = sphi 0, %s181
      %s198 = sphi 0, %s182
    $region4: #{tpu_custom_call.1} parent=1 // loop_header_branch
      %19 = sbr.rel (%p17) target = $region8
    $region5: #{tpu_custom_call.1} parent=1 // loop_body
      %s21 = ssub.s32 %s16, 1
      %s22 = ssub.s32 %s16, 2
      %s23 = sadd.s32 %s16, 1
      %s24 = ssub.s32 %s16, %s23
      %p25 = scmp.eq.s32.totalorder %s24, 0
      %s27 = sadd.s32 %s26, 1
      %s28 = scalar_select %p25, %s26, %s27
      %p31 = pneg %p25
      %p32 = scmp.eq.s32.totalorder %s16, 1
      %p33 = por %p31, %p32
      %p34 = scmp.ne.s32.totalorder %s26, %s29
      %p35 = scmp.eq.s32.totalorder %s16, 0
      %p36 = por %p34, %p35
      %p37 = scmp.ne.s32.totalorder %s26, %s29
      %p38 = scmp.eq.s32.totalorder %s21, 1
      %p39 = por %p37, %p38
      %p40 = scmp.ne.s32.totalorder %s29, %s30
      %p41 = scmp.eq.s32.totalorder %s21, 0
      %p42 = por %p40, %p41
      %p43 = scmp.ne.s32.totalorder %s29, %s30
      %p44 = scmp.eq.s32.totalorder %s22, 1
      %p45 = por %p43, %p44
      %p47 = scmp.ne.s32.totalorder %s30, %s46
      %p48 = scmp.eq.s32.totalorder %s22, 0
      %p49 = por %p47, %p48
      %s51 = sadd.s32 %s50, 1
      %p54 = scmp.eq.s32.totalorder %s16, 1
      %p55 = scmp.ne.s32.totalorder %s50, %s52
      %p56 = scmp.eq.s32.totalorder %s16, 0
      %p57 = por %p55, %p56
      %p58 = scmp.ne.s32.totalorder %s50, %s52
      %p59 = scmp.eq.s32.totalorder %s21, 1
      %p60 = por %p58, %p59
      %p61 = scmp.ne.s32.totalorder %s52, %s53
      %p62 = scmp.eq.s32.totalorder %s21, 0
      %p63 = por %p61, %p62
      %p64 = scmp.ne.s32.totalorder %s52, %s53
      %p65 = scmp.eq.s32.totalorder %s22, 1
      %p66 = por %p64, %p65
      %p68 = scmp.ne.s32.totalorder %s53, %s67
      %p69 = scmp.eq.s32.totalorder %s22, 0
      %p70 = por %p68, %p69
      %s72 = sadd.s32 %s71, 1
      %p75 = scmp.eq.s32.totalorder %s16, 1
      %p76 = scmp.ne.s32.totalorder %s71, %s73
      %p77 = scmp.eq.s32.totalorder %s16, 0
      %p78 = por %p76, %p77
      %p79 = scmp.ne.s32.totalorder %s71, %s73
      %p80 = scmp.eq.s32.totalorder %s21, 1
      %p81 = por %p79, %p80
      %p82 = scmp.ne.s32.totalorder %s73, %s74
      %p83 = scmp.eq.s32.totalorder %s21, 0
      %p84 = por %p82, %p83
      %p85 = scmp.ne.s32.totalorder %s73, %s74
      %p86 = scmp.eq.s32.totalorder %s22, 1
      %p87 = por %p85, %p86
      %p89 = scmp.ne.s32.totalorder %s74, %s88
      %p90 = scmp.eq.s32.totalorder %s22, 0
      %p91 = por %p89, %p90
      %s93 = sadd.s32 %s92, 1
      %p96 = scmp.eq.s32.totalorder %s16, 1
      %p97 = scmp.ne.s32.totalorder %s92, %s94
      %p98 = scmp.eq.s32.totalorder %s16, 0
      %p99 = por %p97, %p98
      %p100 = scmp.ne.s32.totalorder %s92, %s94
      %p101 = scmp.eq.s32.totalorder %s21, 1
      %p102 = por %p100, %p101
      %p103 = scmp.ne.s32.totalorder %s94, %s95
      %p104 = scmp.eq.s32.totalorder %s21, 0
      %p105 = por %p103, %p104
      %p106 = scmp.ne.s32.totalorder %s94, %s95
      %p107 = scmp.eq.s32.totalorder %s22, 1
      %p108 = por %p106, %p107
      %p110 = scmp.ne.s32.totalorder %s95, %s109
      %p111 = scmp.eq.s32.totalorder %s22, 0
      %p112 = por %p110, %p111
      %s114 = sadd.s32 %s113, 1
      %p117 = scmp.eq.s32.totalorder %s16, 1
      %p118 = scmp.ne.s32.totalorder %s113, %s115
      %p119 = scmp.eq.s32.totalorder %s16, 0
      %p120 = por %p118, %p119
      %p121 = scmp.ne.s32.totalorder %s113, %s115
      %p122 = scmp.eq.s32.totalorder %s21, 1
      %p123 = por %p121, %p122
      %p124 = scmp.ne.s32.totalorder %s115, %s116
      %p125 = scmp.eq.s32.totalorder %s21, 0
      %p126 = por %p124, %p125
      %p127 = scmp.ne.s32.totalorder %s115, %s116
      %p128 = scmp.eq.s32.totalorder %s22, 1
      %p129 = por %p127, %p128
      %p131 = scmp.ne.s32.totalorder %s116, %s130
      %p132 = scmp.eq.s32.totalorder %s22, 0
      %p133 = por %p131, %p132
      %s135 = sadd.s32 %s134, 1
      %p138 = scmp.eq.s32.totalorder %s16, 1
      %p139 = scmp.ne.s32.totalorder %s134, %s136
      %p140 = scmp.eq.s32.totalorder %s16, 0
      %p141 = por %p139, %p140
      %p142 = scmp.ne.s32.totalorder %s134, %s136
      %p143 = scmp.eq.s32.totalorder %s21, 1
      %p144 = por %p142, %p143
      %p145 = scmp.ne.s32.totalorder %s136, %s137
      %p146 = scmp.eq.s32.totalorder %s21, 0
      %p147 = por %p145, %p146
      %p148 = scmp.ne.s32.totalorder %s136, %s137
      %p149 = scmp.eq.s32.totalorder %s22, 1
      %p150 = por %p148, %p149
      %p152 = scmp.ne.s32.totalorder %s137, %s151
      %p153 = scmp.eq.s32.totalorder %s22, 0
      %p154 = por %p152, %p153
      %s156 = sadd.s32 %s155, 1
      %p159 = scmp.eq.s32.totalorder %s16, 1
      %p160 = scmp.ne.s32.totalorder %s155, %s157
      %p161 = scmp.eq.s32.totalorder %s16, 0
      %p162 = por %p160, %p161
      %p163 = scmp.ne.s32.totalorder %s155, %s157
      %p164 = scmp.eq.s32.totalorder %s21, 1
      %p165 = por %p163, %p164
      %p166 = scmp.ne.s32.totalorder %s157, %s158
      %p167 = scmp.eq.s32.totalorder %s21, 0
      %p168 = por %p166, %p167
      %p169 = scmp.ne.s32.totalorder %s157, %s158
      %p170 = scmp.eq.s32.totalorder %s22, 1
      %p171 = por %p169, %p170
      %p173 = scmp.ne.s32.totalorder %s158, %s172
      %p174 = scmp.eq.s32.totalorder %s22, 0
      %p175 = por %p173, %p174
      %s176 = ssub.s32 %s16, %s23
      %p177 = scmp.eq.s32.totalorder %s176, 0
      %s179 = sadd.s32 %s178, 1
      %s180 = scalar_select %p177, %s178, %s179
      %p183 = pneg %p177
      %p184 = scmp.eq.s32.totalorder %s16, 1
      %p185 = por %p183, %p184
      %p186 = scmp.ne.s32.totalorder %s178, %s181
      %p187 = scmp.eq.s32.totalorder %s16, 0
      %p188 = por %p186, %p187
      %p189 = scmp.ne.s32.totalorder %s178, %s181
      %p190 = scmp.eq.s32.totalorder %s21, 1
      %p191 = por %p189, %p190
      %p192 = scmp.ne.s32.totalorder %s181, %s182
      %p193 = scmp.eq.s32.totalorder %s21, 0
      %p194 = por %p192, %p193
      %p195 = scmp.ne.s32.totalorder %s181, %s182
      %p196 = scmp.eq.s32.totalorder %s22, 1
      %p197 = por %p195, %p196
      %p199 = scmp.ne.s32.totalorder %s182, %s198
      %p200 = scmp.eq.s32.totalorder %s22, 0
      %p201 = por %p199, %p200
      %p202 = scmp.le.s32.totalorder 1, %s16
      %p203 = scmp.lt.s32.totalorder %s16, 3
      %p204 = pnand %p202, %p203
      %p205 = pneg %p204
      // Predicated region
      $region9: #{tpu_custom_call.1} parent=5 // pred_check
        _
      $region10: #{tpu_custom_call.1} parent=5 // pred_check_branch
        %207 = sbr.rel (%p204) target = $region12
      $region11: #{tpu_custom_call.1} parent=5 // pred_region
        %s208 = ssub.s32 %s16, 1
        // Predicated region
        $region13: #{tpu_custom_call.1} parent=11 // pred_check
          %p209 = pneg %p63
        $region14: #{tpu_custom_call.1} parent=11 // pred_check_branch
          %211 = sbr.rel (%p209) target = $region16
        $region15: #{tpu_custom_call.1} parent=11 // pred_region
          _
        $region16: #{tpu_custom_call.1} parent=11 // pred_fallthru
          _
        // Predicated region
        $region17: #{tpu_custom_call.1} parent=11 // pred_check
          %p212 = pneg %p84
        $region18: #{tpu_custom_call.1} parent=11 // pred_check_branch
          %214 = sbr.rel (%p212) target = $region20
        $region19: #{tpu_custom_call.1} parent=11 // pred_region
          _
        $region20: #{tpu_custom_call.1} parent=11 // pred_fallthru
          _
        // Predicated region
        $region21: #{tpu_custom_call.1} parent=11 // pred_check
          %p215 = pneg %p105
        $region22: #{tpu_custom_call.1} parent=11 // pred_check_branch
          %217 = sbr.rel (%p215) target = $region24
        $region23: #{tpu_custom_call.1} parent=11 // pred_region
          _
        $region24: #{tpu_custom_call.1} parent=11 // pred_fallthru
          _
        // Predicated region
        $region25: #{tpu_custom_call.1} parent=11 // pred_check
          %p218 = pneg %p126
        $region26: #{tpu_custom_call.1} parent=11 // pred_check_branch
          %220 = sbr.rel (%p218) target = $region28
        $region27: #{tpu_custom_call.1} parent=11 // pred_region
          _
        $region28: #{tpu_custom_call.1} parent=11 // pred_fallthru
          _
        // Predicated region
        $region29: #{tpu_custom_call.1} parent=11 // pred_check
          %p221 = pneg %p147
        $region30: #{tpu_custom_call.1} parent=11 // pred_check_branch
          %223 = sbr.rel (%p221) target = $region32
        $region31: #{tpu_custom_call.1} parent=11 // pred_region
          _
        $region32: #{tpu_custom_call.1} parent=11 // pred_fallthru
          _
        // Predicated region
        $region33: #{tpu_custom_call.1} parent=11 // pred_check
          %p224 = pneg %p168
        $region34: #{tpu_custom_call.1} parent=11 // pred_check_branch
          %226 = sbr.rel (%p224) target = $region36
        $region35: #{tpu_custom_call.1} parent=11 // pred_region
          _
        $region36: #{tpu_custom_call.1} parent=11 // pred_fallthru
          _
      $region12: #{tpu_custom_call.1} parent=5 // pred_fallthru
        _
      %p227 = scmp.lt.s32.totalorder %s16, 2
      // Predicated region
      $region37: #{tpu_custom_call.1} parent=5 // pred_check
        %p228 = pneg %p227
      $region38: #{tpu_custom_call.1} parent=5 // pred_check_branch
        %230 = sbr.rel (%p228) target = $region40
      $region39: #{tpu_custom_call.1} parent=5 // pred_region
        // Predicated region
        $region41: #{tpu_custom_call.1} parent=39 // pred_check
          %p231 = pneg %p36
        $region42: #{tpu_custom_call.1} parent=39 // pred_check_branch
          %233 = sbr.rel (%p231) target = $region44
        $region43: #{tpu_custom_call.1} parent=39 // pred_region
          %s234 = smul.u32 32, %s16
          %p235 = scmp.lt.s32.totalorder %s234, 63
          %s236 = scalar_select %p235, %s234, 63
          %s237 = smul.addr %s236, 4
          %s238 = scalar_lea.vmem %s0, %s237
          %s239 = smul.u32 32, %s16
        $region44: #{tpu_custom_call.1} parent=39 // pred_fallthru
          _
      $region40: #{tpu_custom_call.1} parent=5 // pred_fallthru
        _
      %p240 = scmp.le.s32.totalorder 1, %s16
      %p241 = scmp.lt.s32.totalorder %s16, 3
      %p242 = pnand %p240, %p241
      %p243 = pneg %p242
      // Predicated region
      $region45: #{tpu_custom_call.1} parent=5 // pred_check
        _
      $region46: #{tpu_custom_call.1} parent=5 // pred_check_branch
        %245 = sbr.rel (%p242) target = $region48
      $region47: #{tpu_custom_call.1} parent=5 // pred_region
        %s246 = ssub.s32 %s16, 1
        %s247 = smul.u32 32, %s21
        %p248 = scmp.lt.s32.totalorder %s247, 63
        %s249 = scalar_select %p248, %s247, 63
        %s250 = smul.addr %s249, 4
        %s251 = scalar_lea.vmem %s0, %s250
        %p252 = pneg %p42
        %p253 = pneg %p39
        %p254 = pneg %p63
        %p255 = pneg %p60
        %p256 = pneg %p84
        %p257 = pneg %p81
        %p258 = pneg %p105
        %p259 = pneg %p102
        %p260 = pneg %p126
        %p261 = pneg %p123
        %p262 = pneg %p147
        %p263 = pneg %p144
        %p264 = pneg %p168
        %p265 = pneg %p165
        %p266 = pneg %p194
        %p267 = pneg %p191
        %s268 = sand.u32 %s181, 1
        %s269 = scalar_lea.sflag [#allocation3], %s268
        %s270 = sand.u32 %s181, 1
        %s271 = smul.addr %s270, 256
        %s272 = scalar_lea.vmem [#allocation2], %s271
        %s273 = smul.u32 32, %s21
        %p274 = scmp.lt.s32.totalorder %s273, 63
        %s275 = scalar_select %p274, %s273, 63
        %s276 = smul.addr %s275, 4
        %s277 = scalar_lea.vmem %s0, %s276
        %s278 = smul.u32 32, %s21
        %s279 = smul.u32 32, %s21
        %v281 = vld [vmem:[%s277] sm:$0xf]
        %v282 = vld [vmem:[%s277 + $0x4] sm:$0xf]
        %v283 = vld [vmem:[%s277 + $0x8] sm:$0xf]
        %v284 = vld [vmem:[%s277 + $0xc] sm:$0xf]
        %v285 = vld [vmem:[%s277 + $0x10] sm:$0xf]
        %v286 = vld [vmem:[%s277 + $0x14] sm:$0xf]
        %v287 = vld [vmem:[%s277 + $0x18] sm:$0xf]
        %v288 = vld [vmem:[%s277 + $0x1c] sm:$0xf]
        %v289 = vld [vmem:[%s277 + $0x20] sm:$0xf]
        %v290 = vld [vmem:[%s277 + $0x24] sm:$0xf]
        %v291 = vld [vmem:[%s277 + $0x28] sm:$0xf]
        %v292 = vld [vmem:[%s277 + $0x2c] sm:$0xf]
        %v293 = vld [vmem:[%s277 + $0x30] sm:$0xf]
        %v294 = vld [vmem:[%s277 + $0x34] sm:$0xf]
        %v295 = vld [vmem:[%s277 + $0x38] sm:$0xf]
        %v296 = vld [vmem:[%s277 + $0x3c] sm:$0xf]
        %v297 = vld [vmem:[%s277 + $0x40] sm:$0xf]
        %v298 = vld [vmem:[%s277 + $0x44] sm:$0xf]
        %v299 = vld [vmem:[%s277 + $0x48] sm:$0xf]
        %v300 = vld [vmem:[%s277 + $0x4c] sm:$0xf]
        %v301 = vld [vmem:[%s277 + $0x50] sm:$0xf]
        %v302 = vld [vmem:[%s277 + $0x54] sm:$0xf]
        %v303 = vld [vmem:[%s277 + $0x58] sm:$0xf]
        %v304 = vld [vmem:[%s277 + $0x5c] sm:$0xf]
        %v305 = vld [vmem:[%s277 + $0x60] sm:$0xf]
        %v306 = vld [vmem:[%s277 + $0x64] sm:$0xf]
        %v307 = vld [vmem:[%s277 + $0x68] sm:$0xf]
        %v308 = vld [vmem:[%s277 + $0x6c] sm:$0xf]
        %v309 = vld [vmem:[%s277 + $0x70] sm:$0xf]
        %v310 = vld [vmem:[%s277 + $0x74] sm:$0xf]
        %v311 = vld [vmem:[%s277 + $0x78] sm:$0xf]
        %v312 = vld [vmem:[%s277 + $0x7c] sm:$0xf]
        %v313 = vld [vmem:[%s1] sm:$0xf]
        %v314 = vld [vmem:[%s1 + $0x4] sm:$0xf]
        %v315 = vld [vmem:[%s1 + $0x8] sm:$0xf]
        %v316 = vld [vmem:[%s1 + $0xc] sm:$0xf]
        %v317 = vld [vmem:[%s2] sm:$0x1]
        %v319 = vperm.slane %v317, 0
        %v353 = vunpack.c.l.b16 %v281
        %v354 = vunpack.c.l.b16 %v282
        %v355 = vunpack.c.l.b16 %v283
        %v356 = vunpack.c.l.b16 %v284
        %v357 = vunpack.c.l.b16 %v285
        %v358 = vunpack.c.l.b16 %v286
        %v359 = vunpack.c.l.b16 %v287
        %v360 = vunpack.c.l.b16 %v288
        %v361 = vunpack.c.l.b16 %v289
        %v362 = vunpack.c.l.b16 %v290
        %v363 = vunpack.c.l.b16 %v291
        %v364 = vunpack.c.l.b16 %v292
        %v365 = vunpack.c.l.b16 %v293
        %v366 = vunpack.c.l.b16 %v294
        %v367 = vunpack.c.l.b16 %v295
        %v368 = vunpack.c.l.b16 %v296
        %v369 = vunpack.c.l.b16 %v297
        %v370 = vunpack.c.l.b16 %v298
        %v371 = vunpack.c.l.b16 %v299
        %v372 = vunpack.c.l.b16 %v300
        %v373 = vunpack.c.l.b16 %v301
        %v374 = vunpack.c.l.b16 %v302
        %v375 = vunpack.c.l.b16 %v303
        %v376 = vunpack.c.l.b16 %v304
        %v377 = vunpack.c.l.b16 %v305
        %v378 = vunpack.c.l.b16 %v306
        %v379 = vunpack.c.l.b16 %v307
        %v380 = vunpack.c.l.b16 %v308
        %v381 = vunpack.c.l.b16 %v309
        %v382 = vunpack.c.l.b16 %v310
        %v383 = vunpack.c.l.b16 %v311
        %v384 = vunpack.c.l.b16 %v312
        %v385 = vpack.c.b16 %v354, %v353
        %v386 = vpack.c.b16 %v356, %v355
        %v387 = vpack.c.b16 %v358, %v357
        %v388 = vpack.c.b16 %v360, %v359
        %v389 = vpack.c.b16 %v362, %v361
        %v390 = vpack.c.b16 %v364, %v363
        %v391 = vpack.c.b16 %v366, %v365
        %v392 = vpack.c.b16 %v368, %v367
        %v393 = vpack.c.b16 %v370, %v369
        %v394 = vpack.c.b16 %v372, %v371
        %v395 = vpack.c.b16 %v374, %v373
        %v396 = vpack.c.b16 %v376, %v375
        %v397 = vpack.c.b16 %v378, %v377
        %v398 = vpack.c.b16 %v380, %v379
        %v399 = vpack.c.b16 %v382, %v381
        %v400 = vpack.c.b16 %v384, %v383
        %v405 = vunpack.c.l.b16 %v313
        %v406 = vunpack.c.l.b16 %v314
        %v407 = vunpack.c.l.b16 %v315
        %v408 = vunpack.c.l.b16 %v316
        %v409 = vpack.c.b16 %v406, %v405
        %v410 = vpack.c.b16 %v408, %v407
        %vm413 = vcmask 261120
        %v415 = vsel %vm413, %v385, 0
        %v418 = vsel %vm413, %v386, 0
        %v421 = vsel %vm413, %v387, 0
        %v424 = vsel %vm413, %v388, 0
        %v427 = vsel %vm413, %v389, 0
        %v430 = vsel %vm413, %v390, 0
        %v433 = vsel %vm413, %v391, 0
        %v436 = vsel %vm413, %v392, 0
        %v439 = vsel %vm413, %v393, 0
        %v442 = vsel %vm413, %v394, 0
        %v445 = vsel %vm413, %v395, 0
        %v448 = vsel %vm413, %v396, 0
        %v451 = vsel %vm413, %v397, 0
        %v454 = vsel %vm413, %v398, 0
        %v457 = vsel %vm413, %v399, 0
        %v460 = vsel %vm413, %v400, 0
        %462 = vmatpush.bf16.msra.mxu0 0
        %463 = vmatpush.bf16.msra.mxu0 0
        %464 = vmatpush.bf16.msra.mxu0 0
        %465 = vmatpush.bf16.msra.mxu0 0
        %466 = vmatpush.bf16.msra.mxu0 0
        %467 = vmatpush.bf16.msra.mxu0 0
        %468 = vmatpush.bf16.msra.mxu0 %v410
        %469 = vmatpush.bf16.msra.mxu0 %v409
        %470 = vmatmul.bf16.gmra.mxu0 %v415
        %v471 = vpop.f32.mrf.mxu0
        %v472 = vadd.f32 %v319, %v471
        %v473 = vpop.f32.mrf.mxu0
        %v474 = vadd.f32 %v319, %v473
        %475 = vmatmul.bf16.gmra.mxu0 %v418
        %v476 = vpop.f32.mrf.mxu0
        %v477 = vadd.f32 %v319, %v476
        %v478 = vpop.f32.mrf.mxu0
        %v479 = vadd.f32 %v319, %v478
        %480 = vmatmul.bf16.gmra.mxu0 %v421
        %v481 = vpop.f32.mrf.mxu0
        %v482 = vadd.f32 %v319, %v481
        %v483 = vpop.f32.mrf.mxu0
        %v484 = vadd.f32 %v319, %v483
        %485 = vmatmul.bf16.gmra.mxu0 %v424
        %v486 = vpop.f32.mrf.mxu0
        %v487 = vadd.f32 %v319, %v486
        %v488 = vpop.f32.mrf.mxu0
        %v489 = vadd.f32 %v319, %v488
        %490 = vmatmul.bf16.gmra.mxu0 %v427
        %v491 = vpop.f32.mrf.mxu0
        %v492 = vadd.f32 %v319, %v491
        %v493 = vpop.f32.mrf.mxu0
        %v494 = vadd.f32 %v319, %v493
        %495 = vmatmul.bf16.gmra.mxu0 %v430
        %v496 = vpop.f32.mrf.mxu0
        %v497 = vadd.f32 %v319, %v496
        %v498 = vpop.f32.mrf.mxu0
        %v499 = vadd.f32 %v319, %v498
        %500 = vmatmul.bf16.gmra.mxu0 %v433
        %v501 = vpop.f32.mrf.mxu0
        %v502 = vadd.f32 %v319, %v501
        %v503 = vpop.f32.mrf.mxu0
        %v504 = vadd.f32 %v319, %v503
        %505 = vmatmul.bf16.gmra.mxu0 %v436
        %v506 = vpop.f32.mrf.mxu0
        %v507 = vadd.f32 %v319, %v506
        %v508 = vpop.f32.mrf.mxu0
        %v509 = vadd.f32 %v319, %v508
        %510 = vmatmul.bf16.gmra.mxu0 %v439
        %v511 = vpop.f32.mrf.mxu0
        %v512 = vadd.f32 %v319, %v511
        %v513 = vpop.f32.mrf.mxu0
        %v514 = vadd.f32 %v319, %v513
        %515 = vmatmul.bf16.gmra.mxu0 %v442
        %v516 = vpop.f32.mrf.mxu0
        %v517 = vadd.f32 %v319, %v516
        %v518 = vpop.f32.mrf.mxu0
        %v519 = vadd.f32 %v319, %v518
        %520 = vmatmul.bf16.gmra.mxu0 %v445
        %v521 = vpop.f32.mrf.mxu0
        %v522 = vadd.f32 %v319, %v521
        %v523 = vpop.f32.mrf.mxu0
        %v524 = vadd.f32 %v319, %v523
        %525 = vmatmul.bf16.gmra.mxu0 %v448
        %v526 = vpop.f32.mrf.mxu0
        %v527 = vadd.f32 %v319, %v526
        %v528 = vpop.f32.mrf.mxu0
        %v529 = vadd.f32 %v319, %v528
        %530 = vmatmul.bf16.gmra.mxu0 %v451
        %v531 = vpop.f32.mrf.mxu0
        %v532 = vadd.f32 %v319, %v531
        %v533 = vpop.f32.mrf.mxu0
        %v534 = vadd.f32 %v319, %v533
        %535 = vmatmul.bf16.gmra.mxu0 %v454
        %v536 = vpop.f32.mrf.mxu0
        %v537 = vadd.f32 %v319, %v536
        %v538 = vpop.f32.mrf.mxu0
        %v539 = vadd.f32 %v319, %v538
        %540 = vmatmul.bf16.gmra.mxu0 %v457
        %v541 = vpop.f32.mrf.mxu0
        %v542 = vadd.f32 %v319, %v541
        %v543 = vpop.f32.mrf.mxu0
        %v544 = vadd.f32 %v319, %v543
        %545 = vmatmul.bf16.gmra.mxu0 %v460
        %v546 = vpop.f32.mrf.mxu0
        %v547 = vadd.f32 %v319, %v546
        %v548 = vpop.f32.mrf.mxu0
        %v549 = vadd.f32 %v319, %v548
        %550 = vdwg.mxu0
        %v551 = vmax.f32 %v472, 0.0
        %v552 = vmax.f32 %v474, 0.0
        %v553 = vmax.f32 %v477, 0.0
        %v554 = vmax.f32 %v479, 0.0
        %v555 = vmax.f32 %v482, 0.0
        %v556 = vmax.f32 %v484, 0.0
        %v557 = vmax.f32 %v487, 0.0
        %v558 = vmax.f32 %v489, 0.0
        %v559 = vmax.f32 %v492, 0.0
        %v560 = vmax.f32 %v494, 0.0
        %v561 = vmax.f32 %v497, 0.0
        %v562 = vmax.f32 %v499, 0.0
        %v563 = vmax.f32 %v502, 0.0
        %v564 = vmax.f32 %v504, 0.0
        %v565 = vmax.f32 %v507, 0.0
        %v566 = vmax.f32 %v509, 0.0
        %v567 = vmax.f32 %v512, 0.0
        %v568 = vmax.f32 %v514, 0.0
        %v569 = vmax.f32 %v517, 0.0
        %v570 = vmax.f32 %v519, 0.0
        %v571 = vmax.f32 %v522, 0.0
        %v572 = vmax.f32 %v524, 0.0
        %v573 = vmax.f32 %v527, 0.0
        %v574 = vmax.f32 %v529, 0.0
        %v575 = vmax.f32 %v532, 0.0
        %v576 = vmax.f32 %v534, 0.0
        %v577 = vmax.f32 %v537, 0.0
        %v578 = vmax.f32 %v539, 0.0
        %v579 = vmax.f32 %v542, 0.0
        %v580 = vmax.f32 %v544, 0.0
        %v581 = vmax.f32 %v547, 0.0
        %v582 = vmax.f32 %v549, 0.0
        %v583 = vpack.c.bf16 %v552, %v551
        %v584 = vpack.c.bf16 %v554, %v553
        %v585 = vpack.c.bf16 %v556, %v555
        %v586 = vpack.c.bf16 %v558, %v557
        %v587 = vpack.c.bf16 %v560, %v559
        %v588 = vpack.c.bf16 %v562, %v561
        %v589 = vpack.c.bf16 %v564, %v563
        %v590 = vpack.c.bf16 %v566, %v565
        %v591 = vpack.c.bf16 %v568, %v567
        %v592 = vpack.c.bf16 %v570, %v569
        %v593 = vpack.c.bf16 %v572, %v571
        %v594 = vpack.c.bf16 %v574, %v573
        %v595 = vpack.c.bf16 %v576, %v575
        %v596 = vpack.c.bf16 %v578, %v577
        %v597 = vpack.c.bf16 %v580, %v579
        %v598 = vpack.c.bf16 %v582, %v581
        %v599 = vld [vmem:[%s3] sm:$0xf]
        %v600 = vld [vmem:[%s3 + $0x4] sm:$0xf]
        %v601 = vld [vmem:[%s3 + $0x8] sm:$0xf]
        %v602 = vld [vmem:[%s3 + $0xc] sm:$0xf]
        %v603 = vld [vmem:[%s3 + $0x10] sm:$0xf]
        %v604 = vld [vmem:[%s3 + $0x14] sm:$0xf]
        %v605 = vld [vmem:[%s3 + $0x18] sm:$0xf]
        %v606 = vld [vmem:[%s3 + $0x1c] sm:$0xf]
        %v607 = vld [vmem:[%s4] sm:$0x1]
        %v609 = vperm.slane %v607, 0
        %v619 = vunpack.c.l.b16 %v599
        %v620 = vunpack.c.l.b16 %v600
        %v621 = vunpack.c.l.b16 %v601
        %v622 = vunpack.c.l.b16 %v602
        %v623 = vunpack.c.l.b16 %v603
        %v624 = vunpack.c.l.b16 %v604
        %v625 = vunpack.c.l.b16 %v605
        %v626 = vunpack.c.l.b16 %v606
        %v627 = vpack.c.b16 %v620, %v619
        %v628 = vpack.c.b16 %v622, %v621
        %v629 = vpack.c.b16 %v624, %v623
        %v630 = vpack.c.b16 %v626, %v625
        %vm635 = vcmask 523264
        %v637 = vsel %vm635, %v583, 0
        %v640 = vsel %vm635, %v584, 0
        %v643 = vsel %vm635, %v585, 0
        %v646 = vsel %vm635, %v586, 0
        %v649 = vsel %vm635, %v587, 0
        %v652 = vsel %vm635, %v588, 0
        %v655 = vsel %vm635, %v589, 0
        %v658 = vsel %vm635, %v590, 0
        %v661 = vsel %vm635, %v591, 0
        %v664 = vsel %vm635, %v592, 0
        %v667 = vsel %vm635, %v593, 0
        %v670 = vsel %vm635, %v594, 0
        %v673 = vsel %vm635, %v595, 0
        %v676 = vsel %vm635, %v596, 0
        %v679 = vsel %vm635, %v597, 0
        %v682 = vsel %vm635, %v598, 0
        %684 = vmatpush.bf16.msra.mxu0 0
        %685 = vmatpush.bf16.msra.mxu0 0
        %686 = vmatpush.bf16.msra.mxu0 0
        %687 = vmatpush.bf16.msra.mxu0 0
        %688 = vmatpush.bf16.msra.mxu0 %v630
        %689 = vmatpush.bf16.msra.mxu0 %v629
        %690 = vmatpush.bf16.msra.mxu0 %v628
        %691 = vmatpush.bf16.msra.mxu0 %v627
        %692 = vmatmul.bf16.gmra.mxu0 %v637
        %v693 = vpop.f32.mrf.mxu0
        %v694 = vadd.f32 %v609, %v693
        %v695 = vpop.f32.mrf.mxu0
        %v696 = vadd.f32 %v609, %v695
        %697 = vmatmul.bf16.gmra.mxu0 %v640
        %v698 = vpop.f32.mrf.mxu0
        %v699 = vadd.f32 %v609, %v698
        %v700 = vpop.f32.mrf.mxu0
        %v701 = vadd.f32 %v609, %v700
        %702 = vmatmul.bf16.gmra.mxu0 %v643
        %v703 = vpop.f32.mrf.mxu0
        %v704 = vadd.f32 %v609, %v703
        %v705 = vpop.f32.mrf.mxu0
        %v706 = vadd.f32 %v609, %v705
        %707 = vmatmul.bf16.gmra.mxu0 %v646
        %v708 = vpop.f32.mrf.mxu0
        %v709 = vadd.f32 %v609, %v708
        %v710 = vpop.f32.mrf.mxu0
        %v711 = vadd.f32 %v609, %v710
        %712 = vmatmul.bf16.gmra.mxu0 %v649
        %v713 = vpop.f32.mrf.mxu0
        %v714 = vadd.f32 %v609, %v713
        %v715 = vpop.f32.mrf.mxu0
        %v716 = vadd.f32 %v609, %v715
        %717 = vmatmul.bf16.gmra.mxu0 %v652
        %v718 = vpop.f32.mrf.mxu0
        %v719 = vadd.f32 %v609, %v718
        %v720 = vpop.f32.mrf.mxu0
        %v721 = vadd.f32 %v609, %v720
        %722 = vmatmul.bf16.gmra.mxu0 %v655
        %v723 = vpop.f32.mrf.mxu0
        %v724 = vadd.f32 %v609, %v723
        %v725 = vpop.f32.mrf.mxu0
        %v726 = vadd.f32 %v609, %v725
        %727 = vmatmul.bf16.gmra.mxu0 %v658
        %v728 = vpop.f32.mrf.mxu0
        %v729 = vadd.f32 %v609, %v728
        %v730 = vpop.f32.mrf.mxu0
        %v731 = vadd.f32 %v609, %v730
        %732 = vmatmul.bf16.gmra.mxu0 %v661
        %v733 = vpop.f32.mrf.mxu0
        %v734 = vadd.f32 %v609, %v733
        %v735 = vpop.f32.mrf.mxu0
        %v736 = vadd.f32 %v609, %v735
        %737 = vmatmul.bf16.gmra.mxu0 %v664
        %v738 = vpop.f32.mrf.mxu0
        %v739 = vadd.f32 %v609, %v738
        %v740 = vpop.f32.mrf.mxu0
        %v741 = vadd.f32 %v609, %v740
        %742 = vmatmul.bf16.gmra.mxu0 %v667
        %v743 = vpop.f32.mrf.mxu0
        %v744 = vadd.f32 %v609, %v743
        %v745 = vpop.f32.mrf.mxu0
        %v746 = vadd.f32 %v609, %v745
        %747 = vmatmul.bf16.gmra.mxu0 %v670
        %v748 = vpop.f32.mrf.mxu0
        %v749 = vadd.f32 %v609, %v748
        %v750 = vpop.f32.mrf.mxu0
        %v751 = vadd.f32 %v609, %v750
        %752 = vmatmul.bf16.gmra.mxu0 %v673
        %v753 = vpop.f32.mrf.mxu0
        %v754 = vadd.f32 %v609, %v753
        %v755 = vpop.f32.mrf.mxu0
        %v756 = vadd.f32 %v609, %v755
        %757 = vmatmul.bf16.gmra.mxu0 %v676
        %v758 = vpop.f32.mrf.mxu0
        %v759 = vadd.f32 %v609, %v758
        %v760 = vpop.f32.mrf.mxu0
        %v761 = vadd.f32 %v609, %v760
        %762 = vmatmul.bf16.gmra.mxu0 %v679
        %v763 = vpop.f32.mrf.mxu0
        %v764 = vadd.f32 %v609, %v763
        %v765 = vpop.f32.mrf.mxu0
        %v766 = vadd.f32 %v609, %v765
        %767 = vmatmul.bf16.gmra.mxu0 %v682
        %v768 = vpop.f32.mrf.mxu0
        %v769 = vadd.f32 %v609, %v768
        %v770 = vpop.f32.mrf.mxu0
        %v771 = vadd.f32 %v609, %v770
        %772 = vdwg.mxu0
        %v773 = vmax.f32 %v694, 0.0
        %v774 = vmax.f32 %v696, 0.0
        %v775 = vmax.f32 %v699, 0.0
        %v776 = vmax.f32 %v701, 0.0
        %v777 = vmax.f32 %v704, 0.0
        %v778 = vmax.f32 %v706, 0.0
        %v779 = vmax.f32 %v709, 0.0
        %v780 = vmax.f32 %v711, 0.0
        %v781 = vmax.f32 %v714, 0.0
        %v782 = vmax.f32 %v716, 0.0
        %v783 = vmax.f32 %v719, 0.0
        %v784 = vmax.f32 %v721, 0.0
        %v785 = vmax.f32 %v724, 0.0
        %v786 = vmax.f32 %v726, 0.0
        %v787 = vmax.f32 %v729, 0.0
        %v788 = vmax.f32 %v731, 0.0
        %v789 = vmax.f32 %v734, 0.0
        %v790 = vmax.f32 %v736, 0.0
        %v791 = vmax.f32 %v739, 0.0
        %v792 = vmax.f32 %v741, 0.0
        %v793 = vmax.f32 %v744, 0.0
        %v794 = vmax.f32 %v746, 0.0
        %v795 = vmax.f32 %v749, 0.0
        %v796 = vmax.f32 %v751, 0.0
        %v797 = vmax.f32 %v754, 0.0
        %v798 = vmax.f32 %v756, 0.0
        %v799 = vmax.f32 %v759, 0.0
        %v800 = vmax.f32 %v761, 0.0
        %v801 = vmax.f32 %v764, 0.0
        %v802 = vmax.f32 %v766, 0.0
        %v803 = vmax.f32 %v769, 0.0
        %v804 = vmax.f32 %v771, 0.0
        %v805 = vpack.c.bf16 %v774, %v773
        %v806 = vpack.c.bf16 %v776, %v775
        %v807 = vpack.c.bf16 %v778, %v777
        %v808 = vpack.c.bf16 %v780, %v779
        %v809 = vpack.c.bf16 %v782, %v781
        %v810 = vpack.c.bf16 %v784, %v783
        %v811 = vpack.c.bf16 %v786, %v785
        %v812 = vpack.c.bf16 %v788, %v787
        %v813 = vpack.c.bf16 %v790, %v789
        %v814 = vpack.c.bf16 %v792, %v791
        %v815 = vpack.c.bf16 %v794, %v793
        %v816 = vpack.c.bf16 %v796, %v795
        %v817 = vpack.c.bf16 %v798, %v797
        %v818 = vpack.c.bf16 %v800, %v799
        %v819 = vpack.c.bf16 %v802, %v801
        %v820 = vpack.c.bf16 %v804, %v803
        %v821 = vld [vmem:[%s5] sm:$0xf]
        %v822 = vld [vmem:[%s5 + $0x4] sm:$0xf]
        %v823 = vld [vmem:[%s5 + $0x8] sm:$0xf]
        %v824 = vld [vmem:[%s5 + $0xc] sm:$0xf]
        %v825 = vld [vmem:[%s5 + $0x10] sm:$0xf]
        %v826 = vld [vmem:[%s5 + $0x14] sm:$0xf]
        %v827 = vld [vmem:[%s5 + $0x18] sm:$0xf]
        %v828 = vld [vmem:[%s5 + $0x1c] sm:$0xf]
        %v829 = vld [vmem:[%s6] sm:$0x1]
        %v831 = vperm.slane %v829, 0
        %v841 = vunpack.c.l.b16 %v821
        %v842 = vunpack.c.l.b16 %v822
        %v843 = vunpack.c.l.b16 %v823
        %v844 = vunpack.c.l.b16 %v824
        %v845 = vunpack.c.l.b16 %v825
        %v846 = vunpack.c.l.b16 %v826
        %v847 = vunpack.c.l.b16 %v827
        %v848 = vunpack.c.l.b16 %v828
        %v849 = vpack.c.b16 %v842, %v841
        %v850 = vpack.c.b16 %v844, %v843
        %v851 = vpack.c.b16 %v846, %v845
        %v852 = vpack.c.b16 %v848, %v847
        %v858 = vsel %vm635, %v805, 0
        %v861 = vsel %vm635, %v806, 0
        %v864 = vsel %vm635, %v807, 0
        %v867 = vsel %vm635, %v808, 0
        %v870 = vsel %vm635, %v809, 0
        %v873 = vsel %vm635, %v810, 0
        %v876 = vsel %vm635, %v811, 0
        %v879 = vsel %vm635, %v812, 0
        %v882 = vsel %vm635, %v813, 0
        %v885 = vsel %vm635, %v814, 0
        %v888 = vsel %vm635, %v815, 0
        %v891 = vsel %vm635, %v816, 0
        %v894 = vsel %vm635, %v817, 0
        %v897 = vsel %vm635, %v818, 0
        %v900 = vsel %vm635, %v819, 0
        %v903 = vsel %vm635, %v820, 0
        %905 = vmatpush.bf16.msra.mxu0 0
        %906 = vmatpush.bf16.msra.mxu0 0
        %907 = vmatpush.bf16.msra.mxu0 0
        %908 = vmatpush.bf16.msra.mxu0 0
        %909 = vmatpush.bf16.msra.mxu0 %v852
        %910 = vmatpush.bf16.msra.mxu0 %v851
        %911 = vmatpush.bf16.msra.mxu0 %v850
        %912 = vmatpush.bf16.msra.mxu0 %v849
        %913 = vmatmul.bf16.gmra.mxu0 %v858
        %v914 = vpop.f32.mrf.mxu0
        %v915 = vadd.f32 %v831, %v914
        %v916 = vpop.f32.mrf.mxu0
        %v917 = vadd.f32 %v831, %v916
        %918 = vmatmul.bf16.gmra.mxu0 %v861
        %v919 = vpop.f32.mrf.mxu0
        %v920 = vadd.f32 %v831, %v919
        %v921 = vpop.f32.mrf.mxu0
        %v922 = vadd.f32 %v831, %v921
        %923 = vmatmul.bf16.gmra.mxu0 %v864
        %v924 = vpop.f32.mrf.mxu0
        %v925 = vadd.f32 %v831, %v924
        %v926 = vpop.f32.mrf.mxu0
        %v927 = vadd.f32 %v831, %v926
        %928 = vmatmul.bf16.gmra.mxu0 %v867
        %v929 = vpop.f32.mrf.mxu0
        %v930 = vadd.f32 %v831, %v929
        %v931 = vpop.f32.mrf.mxu0
        %v932 = vadd.f32 %v831, %v931
        %933 = vmatmul.bf16.gmra.mxu0 %v870
        %v934 = vpop.f32.mrf.mxu0
        %v935 = vadd.f32 %v831, %v934
        %v936 = vpop.f32.mrf.mxu0
        %v937 = vadd.f32 %v831, %v936
        %938 = vmatmul.bf16.gmra.mxu0 %v873
        %v939 = vpop.f32.mrf.mxu0
        %v940 = vadd.f32 %v831, %v939
        %v941 = vpop.f32.mrf.mxu0
        %v942 = vadd.f32 %v831, %v941
        %943 = vmatmul.bf16.gmra.mxu0 %v876
        %v944 = vpop.f32.mrf.mxu0
        %v945 = vadd.f32 %v831, %v944
        %v946 = vpop.f32.mrf.mxu0
        %v947 = vadd.f32 %v831, %v946
        %948 = vmatmul.bf16.gmra.mxu0 %v879
        %v949 = vpop.f32.mrf.mxu0
        %v950 = vadd.f32 %v831, %v949
        %v951 = vpop.f32.mrf.mxu0
        %v952 = vadd.f32 %v831, %v951
        %953 = vmatmul.bf16.gmra.mxu0 %v882
        %v954 = vpop.f32.mrf.mxu0
        %v955 = vadd.f32 %v831, %v954
        %v956 = vpop.f32.mrf.mxu0
        %v957 = vadd.f32 %v831, %v956
        %958 = vmatmul.bf16.gmra.mxu0 %v885
        %v959 = vpop.f32.mrf.mxu0
        %v960 = vadd.f32 %v831, %v959
        %v961 = vpop.f32.mrf.mxu0
        %v962 = vadd.f32 %v831, %v961
        %963 = vmatmul.bf16.gmra.mxu0 %v888
        %v964 = vpop.f32.mrf.mxu0
        %v965 = vadd.f32 %v831, %v964
        %v966 = vpop.f32.mrf.mxu0
        %v967 = vadd.f32 %v831, %v966
        %968 = vmatmul.bf16.gmra.mxu0 %v891
        %v969 = vpop.f32.mrf.mxu0
        %v970 = vadd.f32 %v831, %v969
        %v971 = vpop.f32.mrf.mxu0
        %v972 = vadd.f32 %v831, %v971
        %973 = vmatmul.bf16.gmra.mxu0 %v894
        %v974 = vpop.f32.mrf.mxu0
        %v975 = vadd.f32 %v831, %v974
        %v976 = vpop.f32.mrf.mxu0
        %v977 = vadd.f32 %v831, %v976
        %978 = vmatmul.bf16.gmra.mxu0 %v897
        %v979 = vpop.f32.mrf.mxu0
        %v980 = vadd.f32 %v831, %v979
        %v981 = vpop.f32.mrf.mxu0
        %v982 = vadd.f32 %v831, %v981
        %983 = vmatmul.bf16.gmra.mxu0 %v900
        %v984 = vpop.f32.mrf.mxu0
        %v985 = vadd.f32 %v831, %v984
        %v986 = vpop.f32.mrf.mxu0
        %v987 = vadd.f32 %v831, %v986
        %988 = vmatmul.bf16.gmra.mxu0 %v903
        %v989 = vpop.f32.mrf.mxu0
        %v990 = vadd.f32 %v831, %v989
        %v991 = vpop.f32.mrf.mxu0
        %v992 = vadd.f32 %v831, %v991
        %993 = vdwg.mxu0
        %v994 = vmax.f32 %v915, 0.0
        %v995 = vmax.f32 %v917, 0.0
        %v996 = vmax.f32 %v920, 0.0
        %v997 = vmax.f32 %v922, 0.0
        %v998 = vmax.f32 %v925, 0.0
        %v999 = vmax.f32 %v927, 0.0
        %v1000 = vmax.f32 %v930, 0.0
        %v1001 = vmax.f32 %v932, 0.0
        %v1002 = vmax.f32 %v935, 0.0
        %v1003 = vmax.f32 %v937, 0.0
        %v1004 = vmax.f32 %v940, 0.0
        %v1005 = vmax.f32 %v942, 0.0
        %v1006 = vmax.f32 %v945, 0.0
        %v1007 = vmax.f32 %v947, 0.0
        %v1008 = vmax.f32 %v950, 0.0
        %v1009 = vmax.f32 %v952, 0.0
        %v1010 = vmax.f32 %v955, 0.0
        %v1011 = vmax.f32 %v957, 0.0
        %v1012 = vmax.f32 %v960, 0.0
        %v1013 = vmax.f32 %v962, 0.0
        %v1014 = vmax.f32 %v965, 0.0
        %v1015 = vmax.f32 %v967, 0.0
        %v1016 = vmax.f32 %v970, 0.0
        %v1017 = vmax.f32 %v972, 0.0
        %v1018 = vmax.f32 %v975, 0.0
        %v1019 = vmax.f32 %v977, 0.0
        %v1020 = vmax.f32 %v980, 0.0
        %v1021 = vmax.f32 %v982, 0.0
        %v1022 = vmax.f32 %v985, 0.0
        %v1023 = vmax.f32 %v987, 0.0
        %v1024 = vmax.f32 %v990, 0.0
        %v1025 = vmax.f32 %v992, 0.0
        %1026 = vst [vmem:[%s272] sm:$0xff] %v994
        %1027 = vst [vmem:[%s272 + $0x8] sm:$0xff] %v995
        %1028 = vst [vmem:[%s272 + $0x10] sm:$0xff] %v996
        %1029 = vst [vmem:[%s272 + $0x18] sm:$0xff] %v997
        %1030 = vst [vmem:[%s272 + $0x20] sm:$0xff] %v998
        %1031 = vst [vmem:[%s272 + $0x28] sm:$0xff] %v999
        %1032 = vst [vmem:[%s272 + $0x30] sm:$0xff] %v1000
        %1033 = vst [vmem:[%s272 + $0x38] sm:$0xff] %v1001
        %1034 = vst [vmem:[%s272 + $0x40] sm:$0xff] %v1002
        %1035 = vst [vmem:[%s272 + $0x48] sm:$0xff] %v1003
        %1036 = vst [vmem:[%s272 + $0x50] sm:$0xff] %v1004
        %1037 = vst [vmem:[%s272 + $0x58] sm:$0xff] %v1005
        %1038 = vst [vmem:[%s272 + $0x60] sm:$0xff] %v1006
        %1039 = vst [vmem:[%s272 + $0x68] sm:$0xff] %v1007
        %1040 = vst [vmem:[%s272 + $0x70] sm:$0xff] %v1008
        %1041 = vst [vmem:[%s272 + $0x78] sm:$0xff] %v1009
        %1042 = vst [vmem:[%s272 + $0x80] sm:$0xff] %v1010
        %1043 = vst [vmem:[%s272 + $0x88] sm:$0xff] %v1011
        %1044 = vst [vmem:[%s272 + $0x90] sm:$0xff] %v1012
        %1045 = vst [vmem:[%s272 + $0x98] sm:$0xff] %v1013
        %1046 = vst [vmem:[%s272 + $0xa0] sm:$0xff] %v1014
        %1047 = vst [vmem:[%s272 + $0xa8] sm:$0xff] %v1015
        %1048 = vst [vmem:[%s272 + $0xb0] sm:$0xff] %v1016
        %1049 = vst [vmem:[%s272 + $0xb8] sm:$0xff] %v1017
        %1050 = vst [vmem:[%s272 + $0xc0] sm:$0xff] %v1018
        %1051 = vst [vmem:[%s272 + $0xc8] sm:$0xff] %v1019
        %1052 = vst [vmem:[%s272 + $0xd0] sm:$0xff] %v1020
        %1053 = vst [vmem:[%s272 + $0xd8] sm:$0xff] %v1021
        %1054 = vst [vmem:[%s272 + $0xe0] sm:$0xff] %v1022
        %1055 = vst [vmem:[%s272 + $0xe8] sm:$0xff] %v1023
        %1056 = vst [vmem:[%s272 + $0xf0] sm:$0xff] %v1024
        %1057 = vst [vmem:[%s272 + $0xf8] sm:$0xff] %v1025
        %s1058 = sand.u32 %s181, 1
        %s1059 = scalar_lea.sflag [#allocation3], %s1058
        %s1060 = sand.u32 %s181, 1
        %s1061 = smul.addr %s1060, 256
        %s1062 = scalar_lea.vmem [#allocation2], %s1061
        // Predicated region
        $region49: #{tpu_custom_call.1} parent=47 // pred_check
          %p1063 = pneg %p191
        $region50: #{tpu_custom_call.1} parent=47 // pred_check_branch
          %1065 = sbr.rel (%p1063) target = $region52
        $region51: #{tpu_custom_call.1} parent=47 // pred_region
          %s1066 = smul.u32 32, %s21
          %1068 = vsyncadd %s1059, 0
          %s1069 = smul.addr %s1066, 8
          %s1070 = scalar_lea.hbm %s7, %s1069
          %s1071 = sshll.u32 %s1062, 4
          %s1072 = int_to_ptr.vmem [resolvable:$true] %s1071
          %s1073 = sshll.u32 %s1070, 4
          %s1074 = int_to_ptr.hbm [resolvable:$true] %s1073
          %1079 = dma.vmem_to_hbm [thread:$0]  %s1072, 4096, %s1074, %s1059, 128, 128, 8
        $region52: #{tpu_custom_call.1} parent=47 // pred_fallthru
          _
      $region48: #{tpu_custom_call.1} parent=5 // pred_fallthru
        _
      %p1080 = scmp.le.s32.totalorder 2, %s16
      // Predicated region
      $region53: #{tpu_custom_call.1} parent=5 // pred_check
        %p1081 = pneg %p1080
      $region54: #{tpu_custom_call.1} parent=5 // pred_check_branch
        %1083 = sbr.rel (%p1081) target = $region56
      $region55: #{tpu_custom_call.1} parent=5 // pred_region
        %s1084 = ssub.s32 %s16, 2
        // Predicated region
        $region57: #{tpu_custom_call.1} parent=55 // pred_check
          %p1085 = pneg %p197
        $region58: #{tpu_custom_call.1} parent=55 // pred_check_branch
          %1087 = sbr.rel (%p1085) target = $region60
        $region59: #{tpu_custom_call.1} parent=55 // pred_region
          %s1088 = sand.u32 %s182, 1
          %s1089 = scalar_lea.sflag [#allocation3], %s1088
          %s1090 = sand.u32 %s182, 1
          %s1091 = smul.addr %s1090, 256
          %s1092 = scalar_lea.vmem [#allocation2], %s1091
          %1094 = dma.done %s1089, 4096
        $region60: #{tpu_custom_call.1} parent=55 // pred_fallthru
          _
      $region56: #{tpu_custom_call.1} parent=5 // pred_fallthru
        _
    $region6: #{tpu_custom_call.1} parent=1 // loop_footer
      %s20 = sadd.s32 1, %s16
    $region7: #{tpu_custom_call.1} parent=1 // loop_footer_branch
      %15 = sbr.rel target = $region3
    $region8: #{tpu_custom_call.1} parent=1 // loop_exit
      _
    %1095 = vsyncpa [#allocation3], 1
    %s1096 = scalar_lea.sflag [#allocation3], 1
    %1097 = vsyncpa %s1096, 1

</llo_original>
